<compile_context>
chip_gen: v5e
topology: v5e:2x2
jax: 0.10.0
libtpu: 0.0.40
codegen_flags: <defaults>
</compile_context>

<pallas_src>
import functools
import math

import jax
import jax.numpy as jnp
from jax.experimental import pallas as pl
from jax.experimental.pallas import tpu as pltpu

DIM_HEAD = 16  # newAtt.dim_head (channel_wise=False path)


def _round_up(x, m):
    return ((x + m - 1) // m) * m


def _newatt_kernel(x_ref, coef_ref, wv_ref, o_ref, *, n_head, dim_head):
    # x_ref   : (1, C, T)   spatial tile of the current batch element (native dtype)
    # coef_ref: (1, C, 1)   fused per-channel coefficient  wq * k(batch) * scale  (f32)
    # wv_ref  : (1, C, 1)   depthwise 1x1 value weights (f32)
    # o_ref   : (1, C, T)
    coef = coef_ref[0]                       # (C, 1)
    wv = wv_ref[0]                           # (C, 1)

    # Per-head processing: sublane slices at static, 8-aligned offsets (dim_head=16).
    # Reduction over the head's channels is a sublane (XLU) sum; broadcasting the (1, T)
    # attention row back over dim_head channels is a sublane broadcast. No MXU needed.
    for h in range(n_head):                  # static unroll (trace time)
        lo = h * dim_head
        rows = pl.ds(lo, dim_head)
        xh = x_ref[0, rows, :].astype(jnp.float32)                    # (DH, T)
        ch = coef[lo:lo + dim_head]                                   # (DH, 1)
        wh = wv[lo:lo + dim_head]                                     # (DH, 1)
        logit = jnp.sum(xh * ch, axis=0, keepdims=True)               # (1, T)
        attn = jax.nn.sigmoid(logit)                                  # (1, T)
        o_ref[0, rows, :] = (xh * wh * attn).astype(o_ref.dtype)      # (DH, T)


def newatt_forward(x_nchw, wq, wk, wv, dim_head=DIM_HEAD, tile_hw=512):
    B, C, H, W = x_nchw.shape
    HW = H * W
    assert C % dim_head == 0
    n_head = C // dim_head
    dtype = x_nchw.dtype

    x = x_nchw.reshape(B, C, HW)

    # ---- key path hoisted out of the kernel (tiny dense XLA ops) ----
    pooled = jnp.mean(x, axis=2, dtype=jnp.float32)                    # (B, C) global pool
    k = pooled @ wk.astype(jnp.float32).T                              # (B, C) 1x1 key mix
    scale = 1.0 / math.sqrt(dim_head * HW)
    coef = (k * wq.astype(jnp.float32)[None, :] * scale)[:, :, None]   # (B, C, 1)
    wv3 = wv.astype(jnp.float32).reshape(1, C, 1)                      # (1, C, 1)

    # ---- lane-dense spatial tiling (pad HW to a multiple of TILE_HW, a 128 multiple) ----
    tile_hw = min(tile_hw, _round_up(HW, 128))
    hw_pad = _round_up(HW, tile_hw)
    if hw_pad != HW:
        # Padded lanes only feed pointwise ops (pool already done on unpadded data) and
        # are sliced off after the kernel, so zero padding is numerically harmless.
        x = jnp.pad(x, ((0, 0), (0, 0), (0, hw_pad - HW)))
    num_tiles = hw_pad // tile_hw

    out = pl.pallas_call(
        functools.partial(_newatt_kernel, n_head=n_head, dim_head=dim_head),
        out_shape=jax.ShapeDtypeStruct((B, C, hw_pad), dtype),
        grid_spec=pltpu.PrefetchScalarGridSpec(
            num_scalar_prefetch=0,
            grid=(B, num_tiles),
            in_specs=[
                pl.BlockSpec((1, C, tile_hw), lambda b, t: (b, 0, t)),
                pl.BlockSpec((1, C, 1), lambda b, t: (b, 0, 0)),
                pl.BlockSpec((1, C, 1), lambda b, t: (0, 0, 0)),
            ],
            out_specs=pl.BlockSpec((1, C, tile_hw), lambda b, t: (b, 0, t)),
        ),
        compiler_params=pltpu.CompilerParams(
            dimension_semantics=("parallel", "parallel"),
            vmem_limit_bytes=32 * 1024 * 1024,
        ),
    )(x, coef, wv3)

    if hw_pad != HW:
        out = out[:, :, :HW]
    return out.reshape(B, C, H, W)


def newatt_reference(x, wq, wk, wv, dim_head=DIM_HEAD):
    # pure-JAX reference mirroring the reconstructed PyTorch MRLA forward (NCHW)
    B, C, H, W = x.shape
    nh = C // dim_head
    q = x * wq[None, :, None, None]
    v = x * wv[None, :, None, None]
    pooled = x.mean(axis=(2, 3))                                 # (B, C)
    k = pooled @ wk.T                                            # (B, C)
    qt = q.reshape(B, nh, dim_head, H * W)
    kt = k.reshape(B, nh, dim_head, 1)
    attn = (qt * kt).sum(axis=2) / math.sqrt(dim_head * H * W)   # (B, nh, HW)
    attn = jax.nn.sigmoid(attn).reshape(B, nh, 1, H, W)
    vt = v.reshape(B, nh, dim_head, H, W)
    return (vt * attn).reshape(B, C, H, W)


if __name__ == "__main__":
    C = 32                              # input_dim = 32 -> n_head = 2 (dim_head = 16)
    key = jax.random.PRNGKey(0)
    kx, kq, kk, kv, kx2 = jax.random.split(key, 5)

    wq = jax.random.normal(kq, (C,), dtype=jnp.float32) * 0.2    # depthwise 1x1 query
    wk = jax.random.normal(kk, (C, C), dtype=jnp.float32) * 0.2  # dense 1x1 key
    wv = jax.random.normal(kv, (C,), dtype=jnp.float32) * 0.2    # depthwise 1x1 value

    # case 1: lane-aligned spatial size (16x16 -> HW=256)
    x1 = jax.random.normal(kx, (2, C, 16, 16), dtype=jnp.float32)
    out1 = jax.block_until_ready(newatt_forward(x1, wq, wk, wv))
    ref1 = jax.block_until_ready(newatt_reference(x1, wq, wk, wv))
    assert out1.shape == x1.shape
    assert jnp.allclose(out1, ref1, atol=1e-5, rtol=1e-5), (
        f"max abs err = {jnp.max(jnp.abs(out1 - ref1))}")

    # case 2: non-128-multiple spatial size (12x12 -> HW=144, exercises lane padding)
    x2 = jax.random.normal(kx2, (2, C, 12, 12), dtype=jnp.float32)
    out2 = jax.block_until_ready(newatt_forward(x2, wq, wk, wv))
    ref2 = jax.block_until_ready(newatt_reference(x2, wq, wk, wv))
    assert out2.shape == x2.shape
    assert jnp.allclose(out2, ref2, atol=1e-5, rtol=1e-5), (
        f"max abs err = {jnp.max(jnp.abs(out2 - ref2))}")

    print("KERNEL_OK")
</pallas_src>

<mosaic_0001>
module attributes {stable_mosaic.version = 11 : i64} {
  func.func @_newatt_kernel(%arg0: i32, %arg1: i32, %arg2: memref<1x32x256xf32, #tpu.memory_space<vmem>>, %arg3: memref<1x32x1xf32, #tpu.memory_space<vmem>>, %arg4: memref<1x32x1xf32, #tpu.memory_space<vmem>>, %arg5: memref<1x32x256xf32, #tpu.memory_space<vmem>>) attributes {dimension_semantics = [#tpu.dimension_semantics<parallel>, #tpu.dimension_semantics<parallel>], iteration_bounds = array<i64: 2, 1>, scalar_prefetch = 0 : i64, scratch_operands = 0 : i64, tpu.core_type = #tpu.core_type<tc>, window_params = [{transform_indices = @transform_0, window_bounds = array<i64: 1, 32, 256>}, {transform_indices = @transform_1, window_bounds = array<i64: 1, 32, 1>}, {pipeline_mode = #tpu.pipeline_mode<synchronous>, transform_indices = @transform_2, window_bounds = array<i64: 1, 32, 1>}, {transform_indices = @transform_3, window_bounds = array<i64: 1, 32, 256>}]} {
    %c0 = arith.constant 0 : index
    %c0_0 = arith.constant 0 : index
    %c0_1 = arith.constant 0 : index
    %0 = vector.load %arg3[%c0, %c0_0, %c0_1] : memref<1x32x1xf32, #tpu.memory_space<vmem>>, vector<1x32x1xf32>
    %1 = vector.shape_cast %0 : vector<1x32x1xf32> to vector<32x1xf32>
    %c0_2 = arith.constant 0 : index
    %c0_3 = arith.constant 0 : index
    %c0_4 = arith.constant 0 : index
    %2 = vector.load %arg4[%c0_2, %c0_3, %c0_4] : memref<1x32x1xf32, #tpu.memory_space<vmem>>, vector<1x32x1xf32>
    %3 = vector.shape_cast %2 : vector<1x32x1xf32> to vector<32x1xf32>
    %c0_5 = arith.constant 0 : index
    %c0_6 = arith.constant 0 : index
    %c0_7 = arith.constant 0 : index
    %4 = vector.load %arg2[%c0_5, %c0_6, %c0_7] : memref<1x32x256xf32, #tpu.memory_space<vmem>>, vector<1x16x256xf32>
    %5 = vector.shape_cast %4 : vector<1x16x256xf32> to vector<16x256xf32>
    %6 = vector.extract_strided_slice %1 {offsets = [0, 0], sizes = [16, 1], strides = [1, 1]} : vector<32x1xf32> to vector<16x1xf32>
    %7 = vector.extract_strided_slice %3 {offsets = [0, 0], sizes = [16, 1], strides = [1, 1]} : vector<32x1xf32> to vector<16x1xf32>
    %8 = vector.broadcast %6 : vector<16x1xf32> to vector<16x256xf32>
    %9 = arith.mulf %5, %8 : vector<16x256xf32>
    %cst = arith.constant dense<0.000000e+00> : vector<256xf32>
    %10 = vector.multi_reduction <add>, %9, %cst [0] : vector<16x256xf32> to vector<256xf32>
    %11 = vector.shape_cast %10 : vector<256xf32> to vector<1x256xf32>
    %12 = arith.negf %11 : vector<1x256xf32>
    %13 = math.exp %12 : vector<1x256xf32>
    %cst_8 = arith.constant 1.000000e+00 : f32
    %14 = vector.broadcast %cst_8 : f32 to vector<1x256xf32>
    %15 = arith.addf %14, %13 : vector<1x256xf32>
    %16 = arith.divf %14, %15 : vector<1x256xf32>
    %17 = vector.broadcast %7 : vector<16x1xf32> to vector<16x256xf32>
    %18 = arith.mulf %5, %17 : vector<16x256xf32>
    %19 = vector.broadcast %16 : vector<1x256xf32> to vector<16x256xf32>
    %20 = arith.mulf %18, %19 : vector<16x256xf32>
    %c0_9 = arith.constant 0 : index
    %c0_10 = arith.constant 0 : index
    %c0_11 = arith.constant 0 : index
    %21 = vector.load %arg5[%c0_9, %c0_10, %c0_11] : memref<1x32x256xf32, #tpu.memory_space<vmem>>, vector<1x16x256xf32>
    %22 = vector.shape_cast %21 : vector<1x16x256xf32> to vector<16x256xf32>
    %23 = vector.shape_cast %20 : vector<16x256xf32> to vector<1x16x256xf32>
    tpu.vector_store %arg5[%c0_9, %c0_10, %c0_11], %23 {strides = array<i32>} : memref<1x32x256xf32, #tpu.memory_space<vmem>>, vector<1x16x256xf32>,
    %c0_12 = arith.constant 0 : index
    %c16 = arith.constant 16 : index
    %c0_13 = arith.constant 0 : index
    %24 = vector.load %arg2[%c0_12, %c16, %c0_13] : memref<1x32x256xf32, #tpu.memory_space<vmem>>, vector<1x16x256xf32>
    %25 = vector.shape_cast %24 : vector<1x16x256xf32> to vector<16x256xf32>
    %26 = vector.extract_strided_slice %1 {offsets = [16, 0], sizes = [16, 1], strides = [1, 1]} : vector<32x1xf32> to vector<16x1xf32>
    %27 = vector.extract_strided_slice %3 {offsets = [16, 0], sizes = [16, 1], strides = [1, 1]} : vector<32x1xf32> to vector<16x1xf32>
    %28 = vector.broadcast %26 : vector<16x1xf32> to vector<16x256xf32>
    %29 = arith.mulf %25, %28 : vector<16x256xf32>
    %cst_14 = arith.constant dense<0.000000e+00> : vector<256xf32>
    %30 = vector.multi_reduction <add>, %29, %cst_14 [0] : vector<16x256xf32> to vector<256xf32>
    %31 = vector.shape_cast %30 : vector<256xf32> to vector<1x256xf32>
    %32 = arith.negf %31 : vector<1x256xf32>
    %33 = math.exp %32 : vector<1x256xf32>
    %cst_15 = arith.constant 1.000000e+00 : f32
    %34 = vector.broadcast %cst_15 : f32 to vector<1x256xf32>
    %35 = arith.addf %34, %33 : vector<1x256xf32>
    %36 = arith.divf %34, %35 : vector<1x256xf32>
    %37 = vector.broadcast %27 : vector<16x1xf32> to vector<16x256xf32>
    %38 = arith.mulf %25, %37 : vector<16x256xf32>
    %39 = vector.broadcast %36 : vector<1x256xf32> to vector<16x256xf32>
    %40 = arith.mulf %38, %39 : vector<16x256xf32>
    %c0_16 = arith.constant 0 : index
    %c16_17 = arith.constant 16 : index
    %c0_18 = arith.constant 0 : index
    %41 = vector.load %arg5[%c0_16, %c16_17, %c0_18] : memref<1x32x256xf32, #tpu.memory_space<vmem>>, vector<1x16x256xf32>
    %42 = vector.shape_cast %41 : vector<1x16x256xf32> to vector<16x256xf32>
    %43 = vector.shape_cast %40 : vector<16x256xf32> to vector<1x16x256xf32>
    tpu.vector_store %arg5[%c0_16, %c16_17, %c0_18], %43 {strides = array<i32>} : memref<1x32x256xf32, #tpu.memory_space<vmem>>, vector<1x16x256xf32>,
    return
  }
  func.func @transform_0(%arg0: i32, %arg1: i32) -> (i32, i32, i32) {
    %c0_i32 = arith.constant 0 : i32
    %c0_i32_0 = arith.constant 0 : i32
    return %arg0, %c0_i32, %arg1 : i32, i32, i32
  }
  func.func @transform_1(%arg0: i32, %arg1: i32) -> (i32, i32, i32) {
    %c0_i32 = arith.constant 0 : i32
    %c0_i32_0 = arith.constant 0 : i32
    %c0_i32_1 = arith.constant 0 : i32
    return %arg0, %c0_i32, %c0_i32_0 : i32, i32, i32
  }
  func.func @transform_2(%arg0: i32, %arg1: i32) -> (i32, i32, i32) {
    %c0_i32 = arith.constant 0 : i32
    %c0_i32_0 = arith.constant 0 : i32
    %c0_i32_1 = arith.constant 0 : i32
    %c0_i32_2 = arith.constant 0 : i32
    return %c0_i32, %c0_i32_0, %c0_i32_1 : i32, i32, i32
  }
  func.func @transform_3(%arg0: i32, %arg1: i32) -> (i32, i32, i32) {
    %c0_i32 = arith.constant 0 : i32
    %c0_i32_0 = arith.constant 0 : i32
    return %arg0, %c0_i32, %arg1 : i32, i32, i32
  }
}

</mosaic_0001>

<llo_original>
// kernel: tpu_custom_call.1
$region0: #{tpu_custom_call.1}
  #allocation0 [shape = 'u32[]', space=smem, size = 0x4, offset = 0x4, fixed_abs, tag = 'smem constant byte address 0x4 - core index']
  #allocation1 [shape = 'u32[72,128]{1,0:T(1,128)}', space=vmem, size = 0x9000, scoped, tag = 'internal scratch']
  %s0 = inlined_call_operand.hbm [shape: f32[2,32,256], index: 0, kind: input, shape index: {}]
  %s1 = inlined_call_operand.vmem [shape: f32[2,32,1], index: 1, kind: input, shape index: {}]
  %s2 = inlined_call_operand.vmem [shape: f32[1,32,1], index: 2, kind: input, shape index: {}]
  %s3 = inlined_call_operand.hbm [shape: f32[2,32,256], index: 3, kind: output, shape index: {}]
  %s4 = sld [smem:[#allocation0]]
  $region49: #{tpu_custom_call.1} parent=0
    _
  %s6 = ssub.s32 1, %s4
  %s7 = scalar_select 0, %s6, %s4
  $region1: #{tpu_custom_call.1} parent=0
    #allocation2 [shape = 'u8[65536]{0}', space=vmem, size = 0x10000, scoped, tag = 'input window, operand 0']
    #allocation3 [shape = 's32[2]{0}', space=sflag, size = 0x8, scoped, tag = 'scoped memory for tpu_custom_call.1']
    #allocation4 [shape = 's32[2]{0}', space=sflag, size = 0x8, scoped, tag = 'scoped memory for tpu_custom_call.1']
    #allocation5 [shape = 'u8[65536]{0}', space=vmem, size = 0x10000, scoped, tag = 'output window, operand 0']
    %8 = vsyncpa [#allocation3], 0
    %s9 = scalar_lea.sflag [#allocation3], 1
    %10 = vsyncpa %s9, 0
    %11 = vsyncpa [#allocation4], 0
    %s12 = scalar_lea.sflag [#allocation4], 1
    %13 = vsyncpa %s12, 0
    loop: start=0, step=1, limit=4
    $region2: #{tpu_custom_call.1} parent=1 // loop_pre_header
      _
    $region3: #{tpu_custom_call.1} parent=1 // loop_header
      %s15 = sphi 0, %s19
      %p16 = scmp.ge.s32.totalorder %s15, 4
      %s22 = sphi 0, %s34
      %s23 = sphi 0, %s30
      %s24 = sphi 0, %s22
      %s25 = sphi 0, %s23
      %s26 = sphi 0, %s24
      %s27 = sphi 0, %s25
      %s39 = sphi 0, %s41
      %s42 = sphi 0, %s39
      %s43 = sphi 0, %s42
      %s59 = sphi 0, %s43
      %s65 = sphi 0, %s67
      %s68 = sphi 0, %s65
      %s69 = sphi 0, %s68
      %s85 = sphi 0, %s69
      %s89 = sphi 0, %s89
      %s91 = sphi 0, %s89
      %s92 = sphi 0, %s91
      %s106 = sphi 0, %s92
      %s114 = sphi 0, %s116
      %s117 = sphi 0, %s114
      %s118 = sphi 0, %s117
      %s134 = sphi 0, %s118
    $region4: #{tpu_custom_call.1} parent=1 // loop_header_branch
      %18 = sbr.rel (%p16) target = $region8
    $region5: #{tpu_custom_call.1} parent=1 // loop_body
      %s20 = ssub.s32 %s15, 1
      %s21 = ssub.s32 %s15, 2
      %s28 = sadd.s32 1, %s23
      %p29 = scmp.ge.s32.totalorder %s28, 1
      %s30 = scalar_select %p29, 0, %s28
      %s31 = sadd.s32 1, %s22
      %s32 = scalar_select %p29, %s31, %s22
      %p33 = scmp.ge.s32.totalorder %s32, 2
      %s34 = scalar_select %p33, 0, %s32
      %s35 = ssub.s32 %s22, %s34
      %s36 = ssub.s32 %s23, %s30
      %s37 = sor.u32 %s35, %s36
      %p38 = scmp.eq.s32.totalorder %s37, 0
      %s40 = sadd.s32 %s39, 1
      %s41 = scalar_select %p38, %s39, %s40
      %p44 = pneg %p38
      %p45 = scmp.eq.s32.totalorder %s15, 1
      %p46 = por %p44, %p45
      %p47 = scmp.ne.s32.totalorder %s39, %s42
      %p48 = scmp.eq.s32.totalorder %s15, 0
      %p49 = por %p47, %p48
      %p50 = scmp.ne.s32.totalorder %s39, %s42
      %p51 = scmp.eq.s32.totalorder %s20, 1
      %p52 = por %p50, %p51
      %p53 = scmp.ne.s32.totalorder %s42, %s43
      %p54 = scmp.eq.s32.totalorder %s20, 0
      %p55 = por %p53, %p54
      %p56 = scmp.ne.s32.totalorder %s42, %s43
      %p57 = scmp.eq.s32.totalorder %s21, 1
      %p58 = por %p56, %p57
      %p60 = scmp.ne.s32.totalorder %s43, %s59
      %p61 = scmp.eq.s32.totalorder %s21, 0
      %p62 = por %p60, %p61
      %s63 = ssub.s32 %s22, %s34
      %p64 = scmp.eq.s32.totalorder %s63, 0
      %s66 = sadd.s32 %s65, 1
      %s67 = scalar_select %p64, %s65, %s66
      %p70 = pneg %p64
      %p71 = scmp.eq.s32.totalorder %s15, 1
      %p72 = por %p70, %p71
      %p73 = scmp.ne.s32.totalorder %s65, %s68
      %p74 = scmp.eq.s32.totalorder %s15, 0
      %p75 = por %p73, %p74
      %p76 = scmp.ne.s32.totalorder %s65, %s68
      %p77 = scmp.eq.s32.totalorder %s20, 1
      %p78 = por %p76, %p77
      %p79 = scmp.ne.s32.totalorder %s68, %s69
      %p80 = scmp.eq.s32.totalorder %s20, 0
      %p81 = por %p79, %p80
      %p82 = scmp.ne.s32.totalorder %s68, %s69
      %p83 = scmp.eq.s32.totalorder %s21, 1
      %p84 = por %p82, %p83
      %p86 = scmp.ne.s32.totalorder %s69, %s85
      %p87 = scmp.eq.s32.totalorder %s21, 0
      %p88 = por %p86, %p87
      %s90 = sadd.s32 %s89, 1
      %p93 = scmp.eq.s32.totalorder %s15, 1
      %p94 = scmp.ne.s32.totalorder %s89, %s91
      %p95 = scmp.eq.s32.totalorder %s15, 0
      %p96 = por %p94, %p95
      %p97 = scmp.ne.s32.totalorder %s89, %s91
      %p98 = scmp.eq.s32.totalorder %s20, 1
      %p99 = por %p97, %p98
      %p100 = scmp.ne.s32.totalorder %s91, %s92
      %p101 = scmp.eq.s32.totalorder %s20, 0
      %p102 = por %p100, %p101
      %p103 = scmp.ne.s32.totalorder %s91, %s92
      %p104 = scmp.eq.s32.totalorder %s21, 1
      %p105 = por %p103, %p104
      %p107 = scmp.ne.s32.totalorder %s92, %s106
      %p108 = scmp.eq.s32.totalorder %s21, 0
      %p109 = por %p107, %p108
      %s110 = ssub.s32 %s22, %s34
      %s111 = ssub.s32 %s23, %s30
      %s112 = sor.u32 %s110, %s111
      %p113 = scmp.eq.s32.totalorder %s112, 0
      %s115 = sadd.s32 %s114, 1
      %s116 = scalar_select %p113, %s114, %s115
      %p119 = pneg %p113
      %p120 = scmp.eq.s32.totalorder %s15, 1
      %p121 = por %p119, %p120
      %p122 = scmp.ne.s32.totalorder %s114, %s117
      %p123 = scmp.eq.s32.totalorder %s15, 0
      %p124 = por %p122, %p123
      %p125 = scmp.ne.s32.totalorder %s114, %s117
      %p126 = scmp.eq.s32.totalorder %s20, 1
      %p127 = por %p125, %p126
      %p128 = scmp.ne.s32.totalorder %s117, %s118
      %p129 = scmp.eq.s32.totalorder %s20, 0
      %p130 = por %p128, %p129
      %p131 = scmp.ne.s32.totalorder %s117, %s118
      %p132 = scmp.eq.s32.totalorder %s21, 1
      %p133 = por %p131, %p132
      %p135 = scmp.ne.s32.totalorder %s118, %s134
      %p136 = scmp.eq.s32.totalorder %s21, 0
      %p137 = por %p135, %p136
      %p138 = scmp.le.s32.totalorder 1, %s15
      %p139 = scmp.lt.s32.totalorder %s15, 3
      %p140 = pnand %p138, %p139
      %p141 = pneg %p140
      // Predicated region
      $region9: #{tpu_custom_call.1} parent=5 // pred_check
        _
      $region10: #{tpu_custom_call.1} parent=5 // pred_check_branch
        %143 = sbr.rel (%p140) target = $region12
      $region11: #{tpu_custom_call.1} parent=5 // pred_region
        %s144 = ssub.s32 %s15, 1
        // Predicated region
        $region13: #{tpu_custom_call.1} parent=11 // pred_check
          %p145 = pneg %p102
        $region14: #{tpu_custom_call.1} parent=11 // pred_check_branch
          %147 = sbr.rel (%p145) target = $region16
        $region15: #{tpu_custom_call.1} parent=11 // pred_region
          _
        $region16: #{tpu_custom_call.1} parent=11 // pred_fallthru
          _
      $region12: #{tpu_custom_call.1} parent=5 // pred_fallthru
        _
      %p148 = scmp.lt.s32.totalorder %s15, 2
      // Predicated region
      $region17: #{tpu_custom_call.1} parent=5 // pred_check
        %p149 = pneg %p148
      $region18: #{tpu_custom_call.1} parent=5 // pred_check_branch
        %151 = sbr.rel (%p149) target = $region20
      $region19: #{tpu_custom_call.1} parent=5 // pred_region
        // Predicated region
        $region21: #{tpu_custom_call.1} parent=19 // pred_check
          %p152 = pneg %p49
        $region22: #{tpu_custom_call.1} parent=19 // pred_check_branch
          %154 = sbr.rel (%p152) target = $region24
        $region23: #{tpu_custom_call.1} parent=19 // pred_region
          %s155 = sand.u32 %s39, 1
          %s156 = scalar_lea.sflag [#allocation3], %s155
          %s157 = sand.u32 %s39, 1
          %s158 = smul.addr %s157, 64
          %s159 = scalar_lea.vmem [#allocation2], %s158
          %s160 = smul.u32 2, %s23
          %162 = vsyncadd %s156, 0
          %s163 = smul.addr %s22, 8
          %s164 = sadd.s32 %s160, %s163
          %s165 = smul.addr %s164, 8
          %s166 = scalar_lea.hbm %s0, %s165
          %s167 = sshll.u32 %s166, 4
          %s168 = int_to_ptr.hbm [resolvable:$true] %s167
          %s169 = sshll.u32 %s159, 4
          %s170 = int_to_ptr.vmem [resolvable:$true] %s169
          %175 = dma.hbm_to_vmem [thread:$0]  %s168, 1024, %s170, %s156, 256, 256, 16
        $region24: #{tpu_custom_call.1} parent=19 // pred_fallthru
          _
        // Predicated region
        $region25: #{tpu_custom_call.1} parent=19 // pred_check
          %p176 = pneg %p75
        $region26: #{tpu_custom_call.1} parent=19 // pred_check_branch
          %178 = sbr.rel (%p176) target = $region28
        $region27: #{tpu_custom_call.1} parent=19 // pred_region
          %p179 = scmp.lt.s32.totalorder %s22, 1
          %s180 = scalar_select %p179, %s22, 1
          %s181 = smul.addr %s180, 4
          %s182 = smul.addr %s181, 8
          %s183 = scalar_lea.vmem %s1, %s182
        $region28: #{tpu_custom_call.1} parent=19 // pred_fallthru
          _
      $region20: #{tpu_custom_call.1} parent=5 // pred_fallthru
        _
      %p184 = scmp.le.s32.totalorder 1, %s15
      %p185 = scmp.lt.s32.totalorder %s15, 3
      %p186 = pnand %p184, %p185
      %p187 = pneg %p186
      // Predicated region
      $region29: #{tpu_custom_call.1} parent=5 // pred_check
        _
      $region30: #{tpu_custom_call.1} parent=5 // pred_check_branch
        %189 = sbr.rel (%p186) target = $region32
      $region31: #{tpu_custom_call.1} parent=5 // pred_region
        %s190 = ssub.s32 %s15, 1
        %s191 = sand.u32 %s42, 1
        %s192 = scalar_lea.sflag [#allocation3], %s191
        %s193 = sand.u32 %s42, 1
        %s194 = smul.addr %s193, 64
        %s195 = scalar_lea.vmem [#allocation2], %s194
        // Predicated region
        $region33: #{tpu_custom_call.1} parent=31 // pred_check
          %p196 = pneg %p55
        $region34: #{tpu_custom_call.1} parent=31 // pred_check_branch
          %198 = sbr.rel (%p196) target = $region36
        $region35: #{tpu_custom_call.1} parent=31 // pred_region
          %200 = dma.done %s192, 1024
        $region36: #{tpu_custom_call.1} parent=31 // pred_fallthru
          _
        %s201 = sand.u32 %s42, 1
        %s202 = scalar_lea.sflag [#allocation3], %s201
        %s203 = sand.u32 %s42, 1
        %s204 = smul.addr %s203, 64
        %s205 = scalar_lea.vmem [#allocation2], %s204
        %p206 = pneg %p55
        %p207 = pneg %p52
        %p208 = scmp.lt.s32.totalorder %s24, 1
        %s209 = scalar_select %p208, %s24, 1
        %s210 = smul.addr %s209, 4
        %s211 = smul.addr %s210, 8
        %s212 = scalar_lea.vmem %s1, %s211
        %p213 = pneg %p81
        %p214 = pneg %p78
        %p215 = pneg %p102
        %p216 = pneg %p99
        %p217 = pneg %p130
        %p218 = pneg %p127
        %s219 = sand.u32 %s117, 1
        %s220 = scalar_lea.sflag [#allocation4], %s219
        %s221 = sand.u32 %s117, 1
        %s222 = smul.addr %s221, 64
        %s223 = scalar_lea.vmem [#allocation5], %s222
        %s224 = smul.u32 2, %s25
        %p225 = scmp.lt.s32.totalorder %s24, 1
        %s226 = scalar_select %p225, %s24, 1
        %s227 = smul.addr %s226, 4
        %s228 = smul.addr %s227, 8
        %s229 = scalar_lea.vmem %s1, %s228
        %s230 = smul.u32 2, %s25
        %v231 = vld [vmem:[%s229] sm:$0xff]
        %v232 = vld [vmem:[%s229 + $0x8] sm:$0xff]
        %v233 = vld [vmem:[%s229 + $0x10] sm:$0xff]
        %v234 = vld [vmem:[%s229 + $0x18] sm:$0xff]
        %v235 = vld [vmem:[%s2] sm:$0xff]
        %v236 = vld [vmem:[%s2 + $0x8] sm:$0xff]
        %v237 = vld [vmem:[%s2 + $0x10] sm:$0xff]
        %v238 = vld [vmem:[%s2 + $0x18] sm:$0xff]
        %v239 = vld [vmem:[%s195] sm:$0xff]
        %v240 = vld [vmem:[%s195 + $0x8] sm:$0xff]
        %v241 = vld [vmem:[%s195 + $0x10] sm:$0xff]
        %v242 = vld [vmem:[%s195 + $0x18] sm:$0xff]
        %244 = vset.pattern.permute.xlu0 0
        %245 = vperm.xlu0 %244, %v231
        %v246 = vpop.permute.xlu0 %245
        %249 = vset.pattern.permute.xlu0 0
        %250 = vperm.xlu0 %249, %v232
        %v251 = vpop.permute.xlu0 %250
        %v253 = vmul.f32 %v239, %v246
        %v254 = vmul.f32 %v240, %v246
        %v255 = vmul.f32 %v241, %v251
        %v256 = vmul.f32 %v242, %v251
        %v257 = vadd.f32 %v253, %v255
        %v258 = vrot.slane %v257, 4
        %v259 = vadd.f32 %v257, %v258
        %v260 = vrot.slane %v259, 2
        %v261 = vadd.f32 %v259, %v260
        %v262 = vrot.slane %v261, 1
        %v263 = vadd.f32 %v261, %v262
        %v264 = vadd.f32 %v254, %v256
        %v265 = vrot.slane %v264, 4
        %v266 = vadd.f32 %v264, %v265
        %v267 = vrot.slane %v266, 2
        %v268 = vadd.f32 %v266, %v267
        %v269 = vrot.slane %v268, 1
        %v270 = vadd.f32 %v268, %v269
        %v271 = vxor.u32 %v263, 2147483648
        %v272 = vxor.u32 %v270, 2147483648
        %v273 = vmul.f32 %v271, 1.442695
        %v274 = vpow.pop %v273
        %v275 = vmul.f32 %v272, 1.442695
        %v276 = vpow.pop %v275
        %v277 = vadd.f32 %v274, 1.0
        %v278 = vadd.f32 %v276, 1.0
        %v279 = vrcp.pop %v277
        %v280 = vmul.f32 %v277, %v279
        %v281 = vsub.f32 1.0, %v280
        %v282 = vmul.f32 %v279, %v281
        %v283 = vadd.f32 %v279, %v282
        %vm284 = vweird.f32 %v277
        %vm285 = vweird.f32 %v279
        %vm286 = vmor %vm284, %vm285
        %v287 = vsel %vm286, %v279, %v283
        %v288 = vand.u32 2147483647, %v277
        %vm289 = vcmp.eq.f32.partialorder %v288, 8.507059e+37
        %v290 = vand.u32 %v277, 2147483648
        %v291 = vor.u32 1.1754944e-38, %v290
        %v292 = vsel %vm289, %v291, %v287
        %v293 = vmul.f32 1.0, %v292
        %v294 = vrcp.pop %v278
        %v295 = vmul.f32 %v278, %v294
        %v296 = vsub.f32 1.0, %v295
        %v297 = vmul.f32 %v294, %v296
        %v298 = vadd.f32 %v294, %v297
        %vm299 = vweird.f32 %v278
        %vm300 = vweird.f32 %v294
        %vm301 = vmor %vm299, %vm300
        %v302 = vsel %vm301, %v294, %v298
        %v303 = vand.u32 2147483647, %v278
        %vm304 = vcmp.eq.f32.partialorder %v303, 8.507059e+37
        %v305 = vand.u32 %v278, 2147483648
        %v306 = vor.u32 1.1754944e-38, %v305
        %v307 = vsel %vm304, %v306, %v302
        %v308 = vmul.f32 1.0, %v307
        %310 = vset.pattern.permute.xlu0 0
        %311 = vperm.xlu0 %310, %v235
        %v312 = vpop.permute.xlu0 %311
        %315 = vset.pattern.permute.xlu0 0
        %316 = vperm.xlu0 %315, %v236
        %v317 = vpop.permute.xlu0 %316
        %v319 = vmul.f32 %v239, %v312
        %v320 = vmul.f32 %v240, %v312
        %v321 = vmul.f32 %v241, %v317
        %v322 = vmul.f32 %v242, %v317
        %v323 = vmul.f32 %v319, %v293
        %v324 = vmul.f32 %v320, %v308
        %v325 = vmul.f32 %v321, %v293
        %v326 = vmul.f32 %v322, %v308
        %327 = vst [vmem:[%s223] sm:$0xff] %v323
        %328 = vst [vmem:[%s223 + $0x8] sm:$0xff] %v324
        %329 = vst [vmem:[%s223 + $0x10] sm:$0xff] %v325
        %330 = vst [vmem:[%s223 + $0x18] sm:$0xff] %v326
        %v331 = vld [vmem:[%s195 + $0x20] sm:$0xff]
        %v332 = vld [vmem:[%s195 + $0x28] sm:$0xff]
        %v333 = vld [vmem:[%s195 + $0x30] sm:$0xff]
        %v334 = vld [vmem:[%s195 + $0x38] sm:$0xff]
        %336 = vset.pattern.permute.xlu0 0
        %337 = vperm.xlu0 %336, %v233
        %v338 = vpop.permute.xlu0 %337
        %341 = vset.pattern.permute.xlu0 0
        %342 = vperm.xlu0 %341, %v234
        %v343 = vpop.permute.xlu0 %342
        %v345 = vmul.f32 %v331, %v338
        %v346 = vmul.f32 %v332, %v338
        %v347 = vmul.f32 %v333, %v343
        %v348 = vmul.f32 %v334, %v343
        %v349 = vadd.f32 %v345, %v347
        %v350 = vrot.slane %v349, 4
        %v351 = vadd.f32 %v349, %v350
        %v352 = vrot.slane %v351, 2
        %v353 = vadd.f32 %v351, %v352
        %v354 = vrot.slane %v353, 1
        %v355 = vadd.f32 %v353, %v354
        %v356 = vadd.f32 %v346, %v348
        %v357 = vrot.slane %v356, 4
        %v358 = vadd.f32 %v356, %v357
        %v359 = vrot.slane %v358, 2
        %v360 = vadd.f32 %v358, %v359
        %v361 = vrot.slane %v360, 1
        %v362 = vadd.f32 %v360, %v361
        %v363 = vxor.u32 %v355, 2147483648
        %v364 = vxor.u32 %v362, 2147483648
        %v365 = vmul.f32 %v363, 1.442695
        %v366 = vpow.pop %v365
        %v367 = vmul.f32 %v364, 1.442695
        %v368 = vpow.pop %v367
        %v369 = vadd.f32 %v366, 1.0
        %v370 = vadd.f32 %v368, 1.0
        %v371 = vrcp.pop %v369
        %v372 = vmul.f32 %v369, %v371
        %v373 = vsub.f32 1.0, %v372
        %v374 = vmul.f32 %v371, %v373
        %v375 = vadd.f32 %v371, %v374
        %vm376 = vweird.f32 %v369
        %vm377 = vweird.f32 %v371
        %vm378 = vmor %vm376, %vm377
        %v379 = vsel %vm378, %v371, %v375
        %v380 = vand.u32 2147483647, %v369
        %vm381 = vcmp.eq.f32.partialorder %v380, 8.507059e+37
        %v382 = vand.u32 %v369, 2147483648
        %v383 = vor.u32 1.1754944e-38, %v382
        %v384 = vsel %vm381, %v383, %v379
        %v385 = vmul.f32 1.0, %v384
        %v386 = vrcp.pop %v370
        %v387 = vmul.f32 %v370, %v386
        %v388 = vsub.f32 1.0, %v387
        %v389 = vmul.f32 %v386, %v388
        %v390 = vadd.f32 %v386, %v389
        %vm391 = vweird.f32 %v370
        %vm392 = vweird.f32 %v386
        %vm393 = vmor %vm391, %vm392
        %v394 = vsel %vm393, %v386, %v390
        %v395 = vand.u32 2147483647, %v370
        %vm396 = vcmp.eq.f32.partialorder %v395, 8.507059e+37
        %v397 = vand.u32 %v370, 2147483648
        %v398 = vor.u32 1.1754944e-38, %v397
        %v399 = vsel %vm396, %v398, %v394
        %v400 = vmul.f32 1.0, %v399
        %402 = vset.pattern.permute.xlu0 0
        %403 = vperm.xlu0 %402, %v237
        %v404 = vpop.permute.xlu0 %403
        %407 = vset.pattern.permute.xlu0 0
        %408 = vperm.xlu0 %407, %v238
        %v409 = vpop.permute.xlu0 %408
        %v411 = vmul.f32 %v331, %v404
        %v412 = vmul.f32 %v332, %v404
        %v413 = vmul.f32 %v333, %v409
        %v414 = vmul.f32 %v334, %v409
        %v415 = vmul.f32 %v411, %v385
        %v416 = vmul.f32 %v412, %v400
        %v417 = vmul.f32 %v413, %v385
        %v418 = vmul.f32 %v414, %v400
        %419 = vst [vmem:[%s223 + $0x20] sm:$0xff] %v415
        %420 = vst [vmem:[%s223 + $0x28] sm:$0xff] %v416
        %421 = vst [vmem:[%s223 + $0x30] sm:$0xff] %v417
        %422 = vst [vmem:[%s223 + $0x38] sm:$0xff] %v418
        %s423 = sand.u32 %s117, 1
        %s424 = scalar_lea.sflag [#allocation4], %s423
        %s425 = sand.u32 %s117, 1
        %s426 = smul.addr %s425, 64
        %s427 = scalar_lea.vmem [#allocation5], %s426
        // Predicated region
        $region37: #{tpu_custom_call.1} parent=31 // pred_check
          %p428 = pneg %p127
        $region38: #{tpu_custom_call.1} parent=31 // pred_check_branch
          %430 = sbr.rel (%p428) target = $region40
        $region39: #{tpu_custom_call.1} parent=31 // pred_region
          %s431 = smul.u32 2, %s25
          %433 = vsyncadd %s424, 0
          %s434 = smul.addr %s24, 8
          %s435 = sadd.s32 %s431, %s434
          %s436 = smul.addr %s435, 8
          %s437 = scalar_lea.hbm %s3, %s436
          %s438 = sshll.u32 %s427, 4
          %s439 = int_to_ptr.vmem [resolvable:$true] %s438
          %s440 = sshll.u32 %s437, 4
          %s441 = int_to_ptr.hbm [resolvable:$true] %s440
          %446 = dma.vmem_to_hbm [thread:$0]  %s439, 1024, %s441, %s424, 256, 256, 16
        $region40: #{tpu_custom_call.1} parent=31 // pred_fallthru
          _
      $region32: #{tpu_custom_call.1} parent=5 // pred_fallthru
        _
      %p447 = scmp.le.s32.totalorder 2, %s15
      // Predicated region
      $region41: #{tpu_custom_call.1} parent=5 // pred_check
        %p448 = pneg %p447
      $region42: #{tpu_custom_call.1} parent=5 // pred_check_branch
        %450 = sbr.rel (%p448) target = $region44
      $region43: #{tpu_custom_call.1} parent=5 // pred_region
        %s451 = ssub.s32 %s15, 2
        // Predicated region
        $region45: #{tpu_custom_call.1} parent=43 // pred_check
          %p452 = pneg %p133
        $region46: #{tpu_custom_call.1} parent=43 // pred_check_branch
          %454 = sbr.rel (%p452) target = $region48
        $region47: #{tpu_custom_call.1} parent=43 // pred_region
          %s455 = sand.u32 %s118, 1
          %s456 = scalar_lea.sflag [#allocation4], %s455
          %s457 = sand.u32 %s118, 1
          %s458 = smul.addr %s457, 64
          %s459 = scalar_lea.vmem [#allocation5], %s458
          %461 = dma.done %s456, 1024
        $region48: #{tpu_custom_call.1} parent=43 // pred_fallthru
          _
      $region44: #{tpu_custom_call.1} parent=5 // pred_fallthru
        _
    $region6: #{tpu_custom_call.1} parent=1 // loop_footer
      %s19 = sadd.s32 1, %s15
    $region7: #{tpu_custom_call.1} parent=1 // loop_footer_branch
      %14 = sbr.rel target = $region3
    $region8: #{tpu_custom_call.1} parent=1 // loop_exit
      _
    %462 = vsyncpa [#allocation3], 1
    %s463 = scalar_lea.sflag [#allocation3], 1
    %464 = vsyncpa %s463, 1
    %465 = vsyncpa [#allocation4], 1
    %s466 = scalar_lea.sflag [#allocation4], 1
    %467 = vsyncpa %s466, 1

</llo_original>
